<compile_context>
chip_gen: v7x
topology: tpu7x:2x2x1
jax: 0.10.0
libtpu: 0.0.40
codegen_flags: <defaults>
</compile_context>

<pallas_src>
import math
import functools

import jax
import jax.numpy as jnp
from jax import lax
from jax.experimental import pallas as pl
from jax.experimental.pallas import tpu as pltpu

# ----------------------------- hyper-parameters ------------------------------
ENC_HID = 32
DEC_HID = 32
SRC_LEN = 8
BATCH = 2

_VMEM = pl.BlockSpec(memory_space=pltpu.MemorySpace.VMEM)


# ------------------------------- Pallas kernel -------------------------------
def attention_kernel(hidden_ref, enc_ref, mask_ref,
                     w_h_ref, w_e_ref, b_ref, v_ref,
                     out_ref):
    """Fused Bahdanau attention: energy -> v-projection -> mask -> softmax.

    hidden_ref: [B, H]        decoder hidden state
    enc_ref:    [B, T, K]     encoder outputs (batch-first, K = 2*enc_hid)
    mask_ref:   [B, T]        1.0 = valid token, 0.0 = pad
    w_h_ref:    [H, H]        attn weight, hidden slice, pre-transposed [in,out]
    w_e_ref:    [K, H]        attn weight, encoder slice, pre-transposed [in,out]
    b_ref:      [1, H]        attn bias
    v_ref:      [1, H]        v weight (nn.Linear(dec_hid, 1, bias=False))
    out_ref:    [B, T]        softmax attention weights
    """
    B, T, K = enc_ref.shape
    H = w_h_ref.shape[1]

    hidden = hidden_ref[...]                                   # [B, H]
    enc = enc_ref[...]                                         # [B, T, K]
    mask = mask_ref[...]                                       # [B, T]

    # energy = tanh(cat(hidden, enc) @ W.T + b)
    #        = tanh(enc @ W_e + hidden @ W_h + b)
    e_h = jnp.dot(hidden, w_h_ref[...],
                  preferred_element_type=jnp.float32)          # [B, H]
    e_e = jnp.dot(enc.reshape(B * T, K), w_e_ref[...],
                  preferred_element_type=jnp.float32).reshape(B, T, H)
    energy = jnp.tanh(e_e + e_h[:, None, :] + b_ref[...][None, :, :])   # [B, T, H]

    # attention = v(energy).squeeze(2)  ->  sum over H of energy * v
    scores = jnp.sum(energy * v_ref[...][None, :, :], axis=-1)          # [B, T]

    # masked_fill(mask == 0, -1e10)
    scores = jnp.where(mask > 0.0, scores, -1e10)

    # softmax over src_len (numerically stable)
    scores = scores - jnp.max(scores, axis=-1, keepdims=True)
    expd = jnp.exp(scores)
    out_ref[...] = expd / jnp.sum(expd, axis=-1, keepdims=True)


# ------------------------------ kernel wrapper --------------------------------
@jax.jit
def attention_forward(hidden, encoder_outputs, mask, attn_w, attn_b, v_w):
    """Matches Attention.forward(hidden, encoder_outputs, mask).

    hidden:           [B, dec_hid]
    encoder_outputs:  [src_len, B, 2*enc_hid]   (time-major, torchtext style)
    mask:             [B, src_len]              (0 = pad)
    attn_w:           [dec_hid, 2*enc_hid + dec_hid]  (PyTorch nn.Linear layout)
    attn_b:           [dec_hid]
    v_w:              [1, dec_hid]
    returns:          [B, src_len]  softmax attention weights
    """
    T, B, K = encoder_outputs.shape
    H = hidden.shape[1]

    enc_bf = jnp.transpose(encoder_outputs, (1, 0, 2))          # [B, T, K]
    # cat order in the spec is (hidden, encoder_outputs) -> split the Linear
    # weight accordingly and pre-transpose to [in, out].
    w_h = attn_w[:, :H].T                                       # [H, H]
    w_e = attn_w[:, H:].T                                       # [K, H]
    b = attn_b.reshape(1, H)
    v = v_w.reshape(1, H)
    maskf = (mask != 0).astype(jnp.float32)                     # [B, T]

    return pl.pallas_call(
        attention_kernel,
        out_shape=jax.ShapeDtypeStruct((B, T), jnp.float32),
        in_specs=[_VMEM] * 7,
        out_specs=_VMEM,
    )(hidden, enc_bf, maskf, w_h, w_e, b, v)


# --------------------------- pure-JAX reference -------------------------------
def attention_ref(hidden, encoder_outputs, mask, attn_w, attn_b, v_w):
    T, B, K = encoder_outputs.shape
    h_rep = jnp.repeat(hidden[:, None, :], T, axis=1)           # [B, T, H]
    enc = jnp.transpose(encoder_outputs, (1, 0, 2))             # [B, T, K]
    cat = jnp.concatenate([h_rep, enc], axis=2)                 # [B, T, H+K]
    energy = jnp.tanh(cat @ attn_w.T + attn_b)                  # [B, T, H]
    attention = (energy @ v_w.T)[..., 0]                        # [B, T]
    attention = jnp.where(mask == 0, -1e10, attention)
    return jax.nn.softmax(attention, axis=1)


# ------------------------------------ main -------------------------------------
if __name__ == "__main__":
    key = jax.random.PRNGKey(0)
    k_h, k_enc, k_w, k_b, k_v = jax.random.split(key, 5)

    B, T, H, K = BATCH, SRC_LEN, DEC_HID, 2 * ENC_HID

    # deterministic example inputs
    hidden = jax.random.normal(k_h, (B, H), jnp.float32)
    encoder_outputs = jax.random.normal(k_enc, (T, B, K), jnp.float32)

    # padded-sequence mask: batch 0 has 8 valid tokens, batch 1 has 5
    src_len = jnp.array([8, 5], dtype=jnp.int32)
    mask = (jnp.arange(T)[None, :] < src_len[:, None]).astype(jnp.int32)   # [B, T]

    # PyTorch-style nn.Linear init (uniform +/- 1/sqrt(fan_in))
    ka = 1.0 / math.sqrt(K + H)
    attn_w = jax.random.uniform(k_w, (H, K + H), jnp.float32, -ka, ka)
    attn_b = jax.random.uniform(k_b, (H,), jnp.float32, -ka, ka)
    kv = 1.0 / math.sqrt(H)
    v_w = jax.random.uniform(k_v, (1, H), jnp.float32, -kv, kv)

    out = attention_forward(hidden, encoder_outputs, mask, attn_w, attn_b, v_w)
    out = jax.block_until_ready(out)

    ref = attention_ref(hidden, encoder_outputs, mask, attn_w, attn_b, v_w)

    assert out.shape == (B, T)
    assert bool(jnp.all(jnp.isfinite(out)))
    # rows are probability distributions
    assert bool(jnp.allclose(jnp.sum(out, axis=1), 1.0, atol=1e-5))
    # padded positions get ~zero weight
    assert bool(jnp.all(jnp.where(mask == 0, out, 0.0) < 1e-6))
    # matches the PyTorch-equivalent reference
    assert bool(jnp.allclose(out, ref, rtol=1e-5, atol=1e-5))

    print("KERNEL_OK")
</pallas_src>

<mosaic_0001>
module attributes {stable_mosaic.version = 11 : i64} {
  func.func @attention_kernel(%arg0: memref<2x32xf32, #tpu.memory_space<vmem>>, %arg1: memref<2x8x64xf32, #tpu.memory_space<vmem>>, %arg2: memref<2x8xf32, #tpu.memory_space<vmem>>, %arg3: memref<32x32xf32, #tpu.memory_space<vmem>>, %arg4: memref<64x32xf32, #tpu.memory_space<vmem>>, %arg5: memref<1x32xf32, #tpu.memory_space<vmem>>, %arg6: memref<1x32xf32, #tpu.memory_space<vmem>>, %arg7: memref<2x8xf32, #tpu.memory_space<vmem>>) attributes {dimension_semantics = [], scalar_prefetch = 0 : i64, scratch_operands = 0 : i64, tpu.core_type = #tpu.core_type<tc>} {
    %c0 = arith.constant 0 : index
    %c0_0 = arith.constant 0 : index
    %0 = vector.load %arg0[%c0, %c0_0] : memref<2x32xf32, #tpu.memory_space<vmem>>, vector<2x32xf32>
    %c0_1 = arith.constant 0 : index
    %c0_2 = arith.constant 0 : index
    %c0_3 = arith.constant 0 : index
    %1 = vector.load %arg1[%c0_1, %c0_2, %c0_3] : memref<2x8x64xf32, #tpu.memory_space<vmem>>, vector<2x8x64xf32>
    %c0_4 = arith.constant 0 : index
    %c0_5 = arith.constant 0 : index
    %2 = vector.load %arg2[%c0_4, %c0_5] : memref<2x8xf32, #tpu.memory_space<vmem>>, vector<2x8xf32>
    %c0_6 = arith.constant 0 : index
    %c0_7 = arith.constant 0 : index
    %3 = vector.load %arg3[%c0_6, %c0_7] : memref<32x32xf32, #tpu.memory_space<vmem>>, vector<32x32xf32>
    %cst = arith.constant dense<0.000000e+00> : vector<2x32xf32>
    %4 = tpu.matmul %0, %3, %cst {dimension_numbers = #tpu.dot_dimension_numbers<[1], [0], [0], [1], [0, 0, 1, 1], [], []>} : vector<2x32xf32>, vector<32x32xf32>, vector<2x32xf32> -> vector<2x32xf32>
    %5 = vector.shape_cast %1 : vector<2x8x64xf32> to vector<16x64xf32>
    %c0_8 = arith.constant 0 : index
    %c0_9 = arith.constant 0 : index
    %6 = vector.load %arg4[%c0_8, %c0_9] : memref<64x32xf32, #tpu.memory_space<vmem>>, vector<64x32xf32>
    %cst_10 = arith.constant dense<0.000000e+00> : vector<16x32xf32>
    %7 = tpu.matmul %5, %6, %cst_10 {dimension_numbers = #tpu.dot_dimension_numbers<[1], [0], [0], [1], [0, 0, 1, 1], [], []>} : vector<16x64xf32>, vector<64x32xf32>, vector<16x32xf32> -> vector<16x32xf32>
    %8 = vector.shape_cast %7 : vector<16x32xf32> to vector<2x8x32xf32>
    %9 = vector.shape_cast %4 : vector<2x32xf32> to vector<2x1x32xf32>
    %10 = vector.broadcast %9 : vector<2x1x32xf32> to vector<2x8x32xf32>
    %11 = arith.addf %8, %10 : vector<2x8x32xf32>
    %c0_11 = arith.constant 0 : index
    %c0_12 = arith.constant 0 : index
    %12 = vector.load %arg5[%c0_11, %c0_12] : memref<1x32xf32, #tpu.memory_space<vmem>>, vector<1x32xf32>
    %13 = vector.shape_cast %12 : vector<1x32xf32> to vector<1x1x32xf32>
    %14 = vector.broadcast %13 : vector<1x1x32xf32> to vector<2x8x32xf32>
    %15 = arith.addf %11, %14 : vector<2x8x32xf32>
    %16 = math.tanh %15 : vector<2x8x32xf32>
    %c0_13 = arith.constant 0 : index
    %c0_14 = arith.constant 0 : index
    %17 = vector.load %arg6[%c0_13, %c0_14] : memref<1x32xf32, #tpu.memory_space<vmem>>, vector<1x32xf32>
    %18 = vector.shape_cast %17 : vector<1x32xf32> to vector<1x1x32xf32>
    %19 = vector.broadcast %18 : vector<1x1x32xf32> to vector<2x8x32xf32>
    %20 = arith.mulf %16, %19 : vector<2x8x32xf32>
    %cst_15 = arith.constant dense<0.000000e+00> : vector<2x8xf32>
    %21 = vector.multi_reduction <add>, %20, %cst_15 [2] : vector<2x8x32xf32> to vector<2x8xf32>
    %cst_16 = arith.constant 0.000000e+00 : f32
    %22 = vector.broadcast %cst_16 : f32 to vector<2x8xf32>
    %23 = arith.cmpf ogt, %2, %22 : vector<2x8xf32>
    %cst_17 = arith.constant -1.000000e+10 : f32
    %24 = vector.broadcast %cst_17 : f32 to vector<2x8xf32>
    %25 = arith.select %23, %21, %24 : vector<2x8xi1>, vector<2x8xf32>
    %cst_18 = arith.constant dense<0xFF800000> : vector<2xf32>
    %26 = vector.multi_reduction <maximumf>, %25, %cst_18 [1] : vector<2x8xf32> to vector<2xf32>
    %27 = vector.shape_cast %26 : vector<2xf32> to vector<2x1xf32>
    %28 = vector.broadcast %27 : vector<2x1xf32> to vector<2x8xf32>
    %29 = arith.subf %25, %28 : vector<2x8xf32>
    %30 = math.exp %29 : vector<2x8xf32>
    %cst_19 = arith.constant dense<0.000000e+00> : vector<2xf32>
    %31 = vector.multi_reduction <add>, %30, %cst_19 [1] : vector<2x8xf32> to vector<2xf32>
    %32 = vector.shape_cast %31 : vector<2xf32> to vector<2x1xf32>
    %33 = vector.broadcast %32 : vector<2x1xf32> to vector<2x8xf32>
    %34 = arith.divf %30, %33 : vector<2x8xf32>
    %c0_20 = arith.constant 0 : index
    %c0_21 = arith.constant 0 : index
    %35 = vector.load %arg7[%c0_20, %c0_21] : memref<2x8xf32, #tpu.memory_space<vmem>>, vector<2x8xf32>
    tpu.vector_store %arg7[%c0_20, %c0_21], %34 {strides = array<i32>} : memref<2x8xf32, #tpu.memory_space<vmem>>, vector<2x8xf32>,
    return
  }
}

</mosaic_0001>

<llo_original>
// kernel: attention_forward.1
$region0: #{attention_forward.1}
  #allocation0 [shape = 'u32[]', space=smem, size = 0x4, offset = 0x4, fixed_abs, tag = 'smem constant byte address 0x4 - core index']
  #allocation1 [shape = 'u32[144,128]{1,0:T(1,128)}', space=vmem, size = 0x12000, scoped, tag = 'internal scratch']
  %s0 = inlined_call_operand.vmem [shape: f32[2,32], index: 0, kind: input, shape index: {}]
  %s1 = inlined_call_operand.vmem [shape: f32[2,8,64], index: 1, kind: input, shape index: {}]
  %s2 = inlined_call_operand.vmem [shape: f32[2,8], index: 2, kind: input, shape index: {}]
  %s3 = inlined_call_operand.vmem [shape: f32[32,32], index: 3, kind: input, shape index: {}]
  %s4 = inlined_call_operand.vmem [shape: f32[64,32], index: 4, kind: input, shape index: {}]
  %s5 = inlined_call_operand.vmem [shape: f32[1,32], index: 5, kind: input, shape index: {}]
  %s6 = inlined_call_operand.vmem [shape: f32[1,32], index: 6, kind: input, shape index: {}]
  %s7 = inlined_call_operand.hbm [shape: f32[2,8], index: 7, kind: output, shape index: {}]
  %s8 = sld [smem:[#allocation0]]
  $region38: #{attention_forward.1} parent=0
    _
  %s10 = ssub.s32 1, %s8
  %s11 = scalar_select 0, %s10, %s8
  $region1: #{attention_forward.1} parent=0
    #allocation2 [shape = 'u8[1024]{0}', space=vmem, size = 0x400, scoped, tag = 'output window, operand 0, single buffered']
    #allocation3 [shape = 's32[1]{0}', space=sflag, size = 0x4, scoped, tag = 'scoped memory for attention_forward.1']
    %12 = vsyncpa [#allocation3], 0
    // Predicated region
    $region2: #{attention_forward.1} parent=1 // pred_check
      _
    $region3: #{attention_forward.1} parent=1 // pred_check_branch
      %14 = sbr.rel (0) target = $region5
    $region4: #{attention_forward.1} parent=1 // pred_region
      _
    $region5: #{attention_forward.1} parent=1 // pred_fallthru
      _
    // Predicated region
    $region6: #{attention_forward.1} parent=1 // pred_check
      _
    $region7: #{attention_forward.1} parent=1 // pred_check_branch
      %16 = sbr.rel (0) target = $region9
    $region8: #{attention_forward.1} parent=1 // pred_region
      _
    $region9: #{attention_forward.1} parent=1 // pred_fallthru
      _
    // Predicated region
    $region10: #{attention_forward.1} parent=1 // pred_check
      _
    $region11: #{attention_forward.1} parent=1 // pred_check_branch
      %18 = sbr.rel (0) target = $region13
    $region12: #{attention_forward.1} parent=1 // pred_region
      _
    $region13: #{attention_forward.1} parent=1 // pred_fallthru
      _
    // Predicated region
    $region14: #{attention_forward.1} parent=1 // pred_check
      _
    $region15: #{attention_forward.1} parent=1 // pred_check_branch
      %20 = sbr.rel (0) target = $region17
    $region16: #{attention_forward.1} parent=1 // pred_region
      _
    $region17: #{attention_forward.1} parent=1 // pred_fallthru
      _
    // Predicated region
    $region18: #{attention_forward.1} parent=1 // pred_check
      _
    $region19: #{attention_forward.1} parent=1 // pred_check_branch
      %22 = sbr.rel (0) target = $region21
    $region20: #{attention_forward.1} parent=1 // pred_region
      _
    $region21: #{attention_forward.1} parent=1 // pred_fallthru
      _
    // Predicated region
    $region22: #{attention_forward.1} parent=1 // pred_check
      _
    $region23: #{attention_forward.1} parent=1 // pred_check_branch
      %24 = sbr.rel (0) target = $region25
    $region24: #{attention_forward.1} parent=1 // pred_region
      _
    $region25: #{attention_forward.1} parent=1 // pred_fallthru
      _
    // Predicated region
    $region26: #{attention_forward.1} parent=1 // pred_check
      _
    $region27: #{attention_forward.1} parent=1 // pred_check_branch
      %26 = sbr.rel (0) target = $region29
    $region28: #{attention_forward.1} parent=1 // pred_region
      _
    $region29: #{attention_forward.1} parent=1 // pred_fallthru
      _
    %v27 = vld [vmem:[%s0] sm:$0x3]
    %v28 = vld [vmem:[%s1] sm:$0xff]
    %v29 = vld [vmem:[%s1 + $0x8] sm:$0xff]
    %v30 = vld [vmem:[%s2] sm:$0x3]
    %v31 = vld [vmem:[%s3] sm:$0xff]
    %v32 = vld [vmem:[%s3 + $0x8] sm:$0xff]
    %v33 = vld [vmem:[%s3 + $0x10] sm:$0xff]
    %v34 = vld [vmem:[%s3 + $0x18] sm:$0xff]
    %vm35 = vcmask 261120
    %v37 = vsel %vm35, %v27, 0
    %39 = vmatprep.subr.mxu0 0.0
    %40 = vmatpush1.msra.mxu0 %v31
    %41 = vmatprep.subr.mxu0 0.0
    %42 = vmatpush1.msra.mxu0 %v32
    %43 = vmatprep.subr.mxu0 0.0
    %44 = vmatpush1.msra.mxu0 %v33
    %45 = vmatprep.subr.mxu0 0.0
    %46 = vmatpush1.msra.mxu0 %v34
    %47 = vmatprep.subr.mxu0 0.0
    %48 = vmatpush1.msra.mxu0 0.0
    %49 = vmatprep.subr.mxu0 0.0
    %50 = vmatpush1.msra.mxu0 0.0
    %51 = vmatprep.subr.mxu0 0.0
    %52 = vmatpush1.msra.mxu0 0.0
    %53 = vmatprep.subr.mxu0 0.0
    %54 = vmatpush1.msra.mxu0 0.0
    %55 = vmatprep.subr.mxu0 0.0
    %56 = vmatpush1.msra.mxu0 0.0
    %57 = vmatprep.subr.mxu0 0.0
    %58 = vmatpush1.msra.mxu0 0.0
    %59 = vmatprep.subr.mxu0 0.0
    %60 = vmatpush1.msra.mxu0 0.0
    %61 = vmatprep.subr.mxu0 0.0
    %62 = vmatpush1.msra.mxu0 0.0
    %63 = vmatprep.subr.mxu0 0.0
    %64 = vmatpush1.msra.mxu0 0.0
    %65 = vmatprep.subr.mxu0 0.0
    %66 = vmatpush1.msra.mxu0 0.0
    %67 = vmatprep.subr.mxu0 0.0
    %68 = vmatpush1.msra.mxu0 0.0
    %69 = vmatprep.subr.mxu0 0.0
    %70 = vmatpush1.msra.mxu0 0.0
    %71 = vmatprep.subr.mxu0 0.0
    %72 = vmatpush1.msra.mxu0 0.0
    %73 = vmatprep.subr.mxu0 0.0
    %74 = vmatpush1.msra.mxu0 0.0
    %75 = vmatprep.subr.mxu0 0.0
    %76 = vmatpush1.msra.mxu0 0.0
    %77 = vmatprep.subr.mxu0 0.0
    %78 = vmatpush1.msra.mxu0 0.0
    %79 = vmatprep.subr.mxu0 0.0
    %80 = vmatpush1.msra.mxu0 0.0
    %81 = vmatprep.subr.mxu0 0.0
    %82 = vmatpush1.msra.mxu0 0.0
    %83 = vmatprep.subr.mxu0 0.0
    %84 = vmatpush1.msra.mxu0 0.0
    %85 = vmatprep.subr.mxu0 0.0
    %86 = vmatpush1.msra.mxu0 0.0
    %87 = vmatprep.subr.mxu0 0.0
    %88 = vmatpush1.msra.mxu0 0.0
    %89 = vmatprep.subr.mxu0 0.0
    %90 = vmatpush1.msra.mxu0 0.0
    %91 = vmatprep.subr.mxu0 0.0
    %92 = vmatpush1.msra.mxu0 0.0
    %93 = vmatprep.subr.mxu0 0.0
    %94 = vmatpush1.msra.mxu0 0.0
    %95 = vmatprep.subr.mxu0 0.0
    %96 = vmatpush1.msra.mxu0 0.0
    %97 = vmatprep.subr.mxu0 0.0
    %98 = vmatpush1.msra.mxu0 0.0
    %99 = vmatprep.subr.mxu0 0.0
    %100 = vmatpush1.msra.mxu0 0.0
    %101 = vmatprep.subr.mxu0 0.0
    %102 = vmatpush1.msra.mxu0 0.0
    %103 = vmatprep.mubr.f32.mxu0 0.0
    %104 = vmatmul.mubr.f32.gmra.mrb[0].mxu0 %v37
    %v105 = vpop.f32.mrb[0].mxu0
    %v106 = vadd.f32 0.0, %v105
    %v107 = vpop.f32.mrb[0].mxu0
    %108 = vdwg.mxu0
    %v109 = vld [vmem:[%s4] sm:$0xff]
    %v110 = vld [vmem:[%s4 + $0x8] sm:$0xff]
    %v111 = vld [vmem:[%s4 + $0x10] sm:$0xff]
    %v112 = vld [vmem:[%s4 + $0x18] sm:$0xff]
    %v113 = vld [vmem:[%s4 + $0x20] sm:$0xff]
    %v114 = vld [vmem:[%s4 + $0x28] sm:$0xff]
    %v115 = vld [vmem:[%s4 + $0x30] sm:$0xff]
    %v116 = vld [vmem:[%s4 + $0x38] sm:$0xff]
    %vm117 = vcmask 523264
    %v119 = vsel %vm117, %v28, 0
    %v122 = vsel %vm117, %v29, 0
    %124 = vmatprep.subr.mxu0 0.0
    %125 = vmatpush1.msra.mxu0 %v109
    %126 = vmatprep.subr.mxu0 0.0
    %127 = vmatpush1.msra.mxu0 %v110
    %128 = vmatprep.subr.mxu0 0.0
    %129 = vmatpush1.msra.mxu0 %v111
    %130 = vmatprep.subr.mxu0 0.0
    %131 = vmatpush1.msra.mxu0 %v112
    %132 = vmatprep.subr.mxu0 0.0
    %133 = vmatpush1.msra.mxu0 %v113
    %134 = vmatprep.subr.mxu0 0.0
    %135 = vmatpush1.msra.mxu0 %v114
    %136 = vmatprep.subr.mxu0 0.0
    %137 = vmatpush1.msra.mxu0 %v115
    %138 = vmatprep.subr.mxu0 0.0
    %139 = vmatpush1.msra.mxu0 %v116
    %140 = vmatprep.subr.mxu0 0.0
    %141 = vmatpush1.msra.mxu0 0.0
    %142 = vmatprep.subr.mxu0 0.0
    %143 = vmatpush1.msra.mxu0 0.0
    %144 = vmatprep.subr.mxu0 0.0
    %145 = vmatpush1.msra.mxu0 0.0
    %146 = vmatprep.subr.mxu0 0.0
    %147 = vmatpush1.msra.mxu0 0.0
    %148 = vmatprep.subr.mxu0 0.0
    %149 = vmatpush1.msra.mxu0 0.0
    %150 = vmatprep.subr.mxu0 0.0
    %151 = vmatpush1.msra.mxu0 0.0
    %152 = vmatprep.subr.mxu0 0.0
    %153 = vmatpush1.msra.mxu0 0.0
    %154 = vmatprep.subr.mxu0 0.0
    %155 = vmatpush1.msra.mxu0 0.0
    %156 = vmatprep.subr.mxu0 0.0
    %157 = vmatpush1.msra.mxu0 0.0
    %158 = vmatprep.subr.mxu0 0.0
    %159 = vmatpush1.msra.mxu0 0.0
    %160 = vmatprep.subr.mxu0 0.0
    %161 = vmatpush1.msra.mxu0 0.0
    %162 = vmatprep.subr.mxu0 0.0
    %163 = vmatpush1.msra.mxu0 0.0
    %164 = vmatprep.subr.mxu0 0.0
    %165 = vmatpush1.msra.mxu0 0.0
    %166 = vmatprep.subr.mxu0 0.0
    %167 = vmatpush1.msra.mxu0 0.0
    %168 = vmatprep.subr.mxu0 0.0
    %169 = vmatpush1.msra.mxu0 0.0
    %170 = vmatprep.subr.mxu0 0.0
    %171 = vmatpush1.msra.mxu0 0.0
    %172 = vmatprep.subr.mxu0 0.0
    %173 = vmatpush1.msra.mxu0 0.0
    %174 = vmatprep.subr.mxu0 0.0
    %175 = vmatpush1.msra.mxu0 0.0
    %176 = vmatprep.subr.mxu0 0.0
    %177 = vmatpush1.msra.mxu0 0.0
    %178 = vmatprep.subr.mxu0 0.0
    %179 = vmatpush1.msra.mxu0 0.0
    %180 = vmatprep.subr.mxu0 0.0
    %181 = vmatpush1.msra.mxu0 0.0
    %182 = vmatprep.subr.mxu0 0.0
    %183 = vmatpush1.msra.mxu0 0.0
    %184 = vmatprep.subr.mxu0 0.0
    %185 = vmatpush1.msra.mxu0 0.0
    %186 = vmatprep.subr.mxu0 0.0
    %187 = vmatpush1.msra.mxu0 0.0
    %188 = vmatprep.mubr.f32.mxu0 0.0
    %189 = vmatmul.mubr.f32.gmra.mrb[0].mxu0 %v119
    %v190 = vpop.f32.mrb[0].mxu0
    %v191 = vadd.f32 0.0, %v190
    %v192 = vpop.f32.mrb[0].mxu0
    %193 = vmatprep.mubr.f32.mxu0 0.0
    %194 = vmatmul.mubr.f32.gmra.mrb[0].mxu0 %v122
    %v195 = vpop.f32.mrb[0].mxu0
    %v196 = vadd.f32 0.0, %v195
    %v197 = vpop.f32.mrb[0].mxu0
    %198 = vdwg.mxu0
    %v201 = vunpack.c.l.s4 1966171168
    %v202 = vunpack.c.0.s8 %v201
    %v203 = vlaneseq
    %v204 = vshrl.u32 %v203, 7
    %v205 = vsub.s32 %v202, %v204
    %v206 = vrot.slane %v106, %v205
    %v207 = vcombine.high %v206, %v206
    %v209 = vunpack.c.l.s4 1966171168
    %v210 = vunpack.c.0.s8 %v209
    %v211 = vlaneseq
    %v212 = vshrl.u32 %v211, 7
    %v213 = vsub.s32 %v210, %v212
    %v214 = vrot.slane %v206, %v213
    %v216 = vunpack.c.l.s4 1966171168
    %v217 = vunpack.c.0.s8 %v216
    %v218 = vlaneseq
    %v219 = vshrl.u32 %v218, 7
    %v220 = vsub.s32 %v217, %v219
    %v221 = vrot.slane %v207, %v220
    %v222 = vlaneseq
    %v223 = vshrl.u32 %v222, 7
    %v224 = vsub.s32 0, %v223
    %v225 = vrot.slane %v214, %v224
    %v226 = vlaneseq
    %v227 = vshrl.u32 %v226, 7
    %v228 = vsub.s32 0, %v227
    %v229 = vrot.slane %v221, %v228
    %v232 = vadd.f32 %v191, %v225
    %v233 = vadd.f32 %v196, %v229
    %v234 = vld [vmem:[%s5] sm:$0x1]
    %v236 = vlaneseq
    %v237 = vshrl.u32 %v236, 7
    %v238 = vsub.s32 0, %v237
    %v239 = vrot.slane %v234, %v238
    %v241 = vadd.f32 %v232, %v239
    %v242 = vadd.f32 %v233, %v239
    %v243 = vtanh.pop %v241
    %v244 = vtanh.pop %v242
    %v245 = vld [vmem:[%s6] sm:$0x1]
    %v247 = vlaneseq
    %v248 = vshrl.u32 %v247, 7
    %v249 = vsub.s32 0, %v248
    %v250 = vrot.slane %v245, %v249
    %v252 = vmul.f32 %v243, %v250
    %v253 = vmul.f32 %v244, %v250
    %v254 = vsel %vm35, %v252, 0.0
    %255 = vadd.xlane.f32.xlu0 %v254
    %v256 = vpop.xlane.xlu0 %255
    %v257 = vsel %vm35, %v253, 0.0
    %258 = vadd.xlane.f32.xlu0 %v257
    %v259 = vpop.xlane.xlu0 %258
    %vm260 = vcmp.gt.f32.partialorder %v30, 0.0
    %v263 = vlaneseq
    %v264 = vand.u32 %v263, 127
    %v265 = vlaneseq
    %v266 = vshrl.u32 %v265, 7
    %v267 = vsub.s32 %v264, %v266
    %v268 = vrot.slane %v256, %v267
    %v269 = vlaneseq
    %v270 = vshrl.u32 %v269, 7
    %v271 = vsub.s32 %v264, %v270
    %v272 = vrot.slane %v259, %v271
    %vm273 = vcmask 1041409
    %v274 = vsel %vm273, %v272, %v268
    %v276 = vsel %vm260, %v274, -1e+10
    %vm277 = vcmask 58368
    %v278 = vsel %vm277, %v276, -inf
    %279 = vmax.xlane.f32.xlu0 %v278
    %v280 = vpop.xlane.xlu0 %279
    %v281 = vsub.f32 %v276, %v280
    %v282 = vmul.f32 %v281, 1.442695
    %v283 = vpow.pop %v282
    %v284 = vsel %vm277, %v283, 0.0
    %285 = vadd.xlane.f32.xlu0 %v284
    %v286 = vpop.xlane.xlu0 %285
    %v287 = vrcp.pop %v286
    %v288 = vmul.f32 %v283, %v287
    %289 = vst.msk [vmem:[#allocation2] sm:$0x3] %vm277, %v288
    // Predicated region
    $region30: #{attention_forward.1} parent=1 // pred_check
      _
    $region31: #{attention_forward.1} parent=1 // pred_check_branch
      %291 = sbr.rel (0) target = $region33
    $region32: #{attention_forward.1} parent=1 // pred_region
      %s293 = ssub.s32 32, 32
      %294 = vsyncadd [#allocation3], %s293
      %s296 = sshll.u32 [#allocation2], 4
      %s297 = int_to_ptr.vmem [resolvable:$true] %s296
      %299 = dma.vmem_to_hbm [thread:$0]  %s297, 32, %s7, [#allocation3]
    $region33: #{attention_forward.1} parent=1 // pred_fallthru
      _
    // Predicated region
    $region34: #{attention_forward.1} parent=1 // pred_check
      _
    $region35: #{attention_forward.1} parent=1 // pred_check_branch
      %301 = sbr.rel (0) target = $region37
    $region36: #{attention_forward.1} parent=1 // pred_region
      %302 = dma.done [#allocation3], 32
    $region37: #{attention_forward.1} parent=1 // pred_fallthru
      _
    %303 = vsyncpa [#allocation3], 1

</llo_original>
